<compile_context>
chip_gen: v7x
topology: tpu7x:2x2x1
jax: 0.10.0
libtpu: 0.0.40
codegen_flags: <defaults>
</compile_context>

<pallas_src>
import jax
import jax.numpy as jnp
from jax.experimental import pallas as pl
from jax.experimental.pallas import tpu as pltpu


def rnn_kernel(x_ref, h0_ref, wih_ref, whh_ref, b_ref, wout_ref, bout_ref,
               y_ref, hlast_ref, hall_ref):
    """Whole-sequence RNN in one invocation.

    x_ref:     (T*B, I)   time-major input slab (all timesteps)
    h0_ref:    (B, H)     initial hidden state
    wih_ref:   (I, H)     W_ih^T
    whh_ref:   (H, H)     W_hh^T
    b_ref:     (1, H)     b_ih + b_hh (pre-summed in the wrapper)
    wout_ref:  (H, O)     W_out^T
    bout_ref:  (1, O)     b_out
    y_ref:     (T*B, O)   output slab (all timesteps)
    hlast_ref: (B, H)     final hidden state
    hall_ref:  (T*B, H)   f32 VMEM scratch holding every h_t
    """
    B = h0_ref.shape[0]
    T = x_ref.shape[0] // B          # static Python ints

    # (1) Hoisted input projection: one MXU pass over every timestep, with the
    #     fused (pre-summed) bias added once.
    xproj = (jnp.dot(x_ref[...], wih_ref[...],
                     preferred_element_type=jnp.float32)
             + b_ref[...])                                    # (T*B, H) f32

    # (2) Serial recurrence, statically unrolled: only h @ W_hh^T + tanh sit on
    #     the per-step critical path.
    h = h0_ref[...].astype(jnp.float32)                       # (B, H)
    for t in range(T):
        pre = xproj[t * B:(t + 1) * B, :] + jnp.dot(
            h, whh_ref[...], preferred_element_type=jnp.float32)
        h = jnp.tanh(pre)
        hall_ref[t * B:(t + 1) * B, :] = h

    hlast_ref[...] = h.astype(hlast_ref.dtype)

    # (3) Hoisted output projection: one batched matmul + one store.
    y = (jnp.dot(hall_ref[...], wout_ref[...],
                 preferred_element_type=jnp.float32)
         + bout_ref[...])                                     # (T*B, O)
    y_ref[...] = y.astype(y_ref.dtype)


def simple_rnn_forward(x, state, w_ih, w_hh, b_ih, b_hh, w_out, b_out):
    """x: (T, B, I) f32, state: (1, B, H) f32.
    Returns (y: (T, B, O), state: (1, B, H)) — same semantics as SimpleRNN."""
    T, B, I = x.shape
    H = w_ih.shape[0]
    O = w_out.shape[0]

    # Pure-JAX glue: flatten time into the matmul M dim, pre-transpose weights,
    # pre-sum the two RNN biases, make biases 2-D rows for TPU layout.
    x2d = x.reshape(T * B, I)
    h0 = state[0]                        # (B, H)
    wih_t = w_ih.T                       # (I, H)
    whh_t = w_hh.T                       # (H, H)
    wout_t = w_out.T                     # (H, O)
    b_sum = (b_ih + b_hh).reshape(1, H)  # fused bias
    bout2 = b_out.reshape(1, O)

    vmem = pl.BlockSpec(memory_space=pltpu.MemorySpace.VMEM)

    y2d, h_last = pl.pallas_call(
        rnn_kernel,
        out_shape=(
            jax.ShapeDtypeStruct((T * B, O), x.dtype),
            jax.ShapeDtypeStruct((B, H), x.dtype),
        ),
        in_specs=[vmem] * 7,
        out_specs=(vmem, vmem),
        scratch_shapes=[pltpu.VMEM((T * B, H), jnp.float32)],
    )(x2d, h0, wih_t, whh_t, b_sum, wout_t, bout2)

    return y2d.reshape(T, B, O), h_last[None]


def init_params(key, input_size, hidden_size, output_size):
    # Deterministic init matching PyTorch's U(-1/sqrt(H), 1/sqrt(H)) convention.
    ks = jax.random.split(key, 6)
    k = 1.0 / jnp.sqrt(hidden_size)
    w_ih = jax.random.uniform(ks[0], (hidden_size, input_size), jnp.float32, -k, k)
    w_hh = jax.random.uniform(ks[1], (hidden_size, hidden_size), jnp.float32, -k, k)
    b_ih = jax.random.uniform(ks[2], (hidden_size,), jnp.float32, -k, k)
    b_hh = jax.random.uniform(ks[3], (hidden_size,), jnp.float32, -k, k)
    w_out = jax.random.uniform(ks[4], (output_size, hidden_size), jnp.float32, -k, k)
    b_out = jax.random.uniform(ks[5], (output_size,), jnp.float32, -k, k)
    return w_ih, w_hh, b_ih, b_hh, w_out, b_out


def reference_forward(x, state, w_ih, w_hh, b_ih, b_hh, w_out, b_out):
    # Pure-JAX reference for sanity checking (matches nn.RNN tanh + Linear).
    def step(h, x_t):
        h = jnp.tanh(x_t @ w_ih.T + b_ih + h @ w_hh.T + b_hh)
        return h, h
    h_last, hs = jax.lax.scan(step, state[0], x)
    y = hs @ w_out.T + b_out
    return y, h_last[None]


if __name__ == "__main__":
    T, B, I, H, O = 8, 2, 16, 32, 8

    key = jax.random.PRNGKey(0)
    kx, kh, kp = jax.random.split(key, 3)
    x = jax.random.normal(kx, (T, B, I), jnp.float32)
    state = jax.random.normal(kh, (1, B, H), jnp.float32)
    params = init_params(kp, I, H, O)

    y, h_final = simple_rnn_forward(x, state, *params)
    jax.block_until_ready((y, h_final))

    # Sanity check against pure-JAX reference.
    y_ref, h_ref = reference_forward(x, state, *params)
    assert y.shape == (T, B, O) and h_final.shape == (1, B, H)
    assert jnp.allclose(y, y_ref, atol=1e-5, rtol=1e-4)
    assert jnp.allclose(h_final, h_ref, atol=1e-5, rtol=1e-4)

    print("KERNEL_OK")
</pallas_src>

<mosaic_0001>
module attributes {stable_mosaic.version = 11 : i64} {
  func.func @rnn_kernel(%arg0: memref<16x16xf32, #tpu.memory_space<vmem>>, %arg1: memref<2x32xf32, #tpu.memory_space<vmem>>, %arg2: memref<16x32xf32, #tpu.memory_space<vmem>>, %arg3: memref<32x32xf32, #tpu.memory_space<vmem>>, %arg4: memref<1x32xf32, #tpu.memory_space<vmem>>, %arg5: memref<32x8xf32, #tpu.memory_space<vmem>>, %arg6: memref<1x8xf32, #tpu.memory_space<vmem>>, %arg7: memref<16x8xf32, #tpu.memory_space<vmem>>, %arg8: memref<2x32xf32, #tpu.memory_space<vmem>>, %arg9: memref<16x32xf32, #tpu.memory_space<vmem>>) attributes {dimension_semantics = [], scalar_prefetch = 0 : i64, scratch_operands = 1 : i64, tpu.core_type = #tpu.core_type<tc>} {
    %c0 = arith.constant 0 : index
    %c0_0 = arith.constant 0 : index
    %0 = vector.load %arg0[%c0, %c0_0] : memref<16x16xf32, #tpu.memory_space<vmem>>, vector<16x16xf32>
    %c0_1 = arith.constant 0 : index
    %c0_2 = arith.constant 0 : index
    %1 = vector.load %arg2[%c0_1, %c0_2] : memref<16x32xf32, #tpu.memory_space<vmem>>, vector<16x32xf32>
    %cst = arith.constant dense<0.000000e+00> : vector<16x32xf32>
    %2 = tpu.matmul %0, %1, %cst {dimension_numbers = #tpu.dot_dimension_numbers<[1], [0], [0], [1], [0, 0, 1, 1], [], []>} : vector<16x16xf32>, vector<16x32xf32>, vector<16x32xf32> -> vector<16x32xf32>
    %c0_3 = arith.constant 0 : index
    %c0_4 = arith.constant 0 : index
    %3 = vector.load %arg4[%c0_3, %c0_4] : memref<1x32xf32, #tpu.memory_space<vmem>>, vector<1x32xf32>
    %4 = vector.broadcast %3 : vector<1x32xf32> to vector<16x32xf32>
    %5 = arith.addf %2, %4 : vector<16x32xf32>
    %c0_5 = arith.constant 0 : index
    %c0_6 = arith.constant 0 : index
    %6 = vector.load %arg1[%c0_5, %c0_6] : memref<2x32xf32, #tpu.memory_space<vmem>>, vector<2x32xf32>
    %7 = vector.extract_strided_slice %5 {offsets = [0, 0], sizes = [2, 32], strides = [1, 1]} : vector<16x32xf32> to vector<2x32xf32>
    %c0_7 = arith.constant 0 : index
    %c0_8 = arith.constant 0 : index
    %8 = vector.load %arg3[%c0_7, %c0_8] : memref<32x32xf32, #tpu.memory_space<vmem>>, vector<32x32xf32>
    %cst_9 = arith.constant dense<0.000000e+00> : vector<2x32xf32>
    %9 = tpu.matmul %6, %8, %cst_9 {dimension_numbers = #tpu.dot_dimension_numbers<[1], [0], [0], [1], [0, 0, 1, 1], [], []>} : vector<2x32xf32>, vector<32x32xf32>, vector<2x32xf32> -> vector<2x32xf32>
    %10 = arith.addf %7, %9 : vector<2x32xf32>
    %11 = math.tanh %10 : vector<2x32xf32>
    %c0_10 = arith.constant 0 : index
    %c0_11 = arith.constant 0 : index
    %12 = vector.load %arg9[%c0_10, %c0_11] : memref<16x32xf32, #tpu.memory_space<vmem>>, vector<2x32xf32>
    tpu.vector_store %arg9[%c0_10, %c0_11], %11 {strides = array<i32>} : memref<16x32xf32, #tpu.memory_space<vmem>>, vector<2x32xf32>,
    %13 = vector.extract_strided_slice %5 {offsets = [2, 0], sizes = [2, 32], strides = [1, 1]} : vector<16x32xf32> to vector<2x32xf32>
    %c0_12 = arith.constant 0 : index
    %c0_13 = arith.constant 0 : index
    %14 = vector.load %arg3[%c0_12, %c0_13] : memref<32x32xf32, #tpu.memory_space<vmem>>, vector<32x32xf32>
    %cst_14 = arith.constant dense<0.000000e+00> : vector<2x32xf32>
    %15 = tpu.matmul %11, %14, %cst_14 {dimension_numbers = #tpu.dot_dimension_numbers<[1], [0], [0], [1], [0, 0, 1, 1], [], []>} : vector<2x32xf32>, vector<32x32xf32>, vector<2x32xf32> -> vector<2x32xf32>
    %16 = arith.addf %13, %15 : vector<2x32xf32>
    %17 = math.tanh %16 : vector<2x32xf32>
    %c2 = arith.constant 2 : index
    %c0_15 = arith.constant 0 : index
    %18 = vector.load %arg9[%c2, %c0_15] : memref<16x32xf32, #tpu.memory_space<vmem>>, vector<2x32xf32>
    tpu.vector_store %arg9[%c2, %c0_15], %17 {strides = array<i32>} : memref<16x32xf32, #tpu.memory_space<vmem>>, vector<2x32xf32>,
    %19 = vector.extract_strided_slice %5 {offsets = [4, 0], sizes = [2, 32], strides = [1, 1]} : vector<16x32xf32> to vector<2x32xf32>
    %c0_16 = arith.constant 0 : index
    %c0_17 = arith.constant 0 : index
    %20 = vector.load %arg3[%c0_16, %c0_17] : memref<32x32xf32, #tpu.memory_space<vmem>>, vector<32x32xf32>
    %cst_18 = arith.constant dense<0.000000e+00> : vector<2x32xf32>
    %21 = tpu.matmul %17, %20, %cst_18 {dimension_numbers = #tpu.dot_dimension_numbers<[1], [0], [0], [1], [0, 0, 1, 1], [], []>} : vector<2x32xf32>, vector<32x32xf32>, vector<2x32xf32> -> vector<2x32xf32>
    %22 = arith.addf %19, %21 : vector<2x32xf32>
    %23 = math.tanh %22 : vector<2x32xf32>
    %c4 = arith.constant 4 : index
    %c0_19 = arith.constant 0 : index
    %24 = vector.load %arg9[%c4, %c0_19] : memref<16x32xf32, #tpu.memory_space<vmem>>, vector<2x32xf32>
    tpu.vector_store %arg9[%c4, %c0_19], %23 {strides = array<i32>} : memref<16x32xf32, #tpu.memory_space<vmem>>, vector<2x32xf32>,
    %25 = vector.extract_strided_slice %5 {offsets = [6, 0], sizes = [2, 32], strides = [1, 1]} : vector<16x32xf32> to vector<2x32xf32>
    %c0_20 = arith.constant 0 : index
    %c0_21 = arith.constant 0 : index
    %26 = vector.load %arg3[%c0_20, %c0_21] : memref<32x32xf32, #tpu.memory_space<vmem>>, vector<32x32xf32>
    %cst_22 = arith.constant dense<0.000000e+00> : vector<2x32xf32>
    %27 = tpu.matmul %23, %26, %cst_22 {dimension_numbers = #tpu.dot_dimension_numbers<[1], [0], [0], [1], [0, 0, 1, 1], [], []>} : vector<2x32xf32>, vector<32x32xf32>, vector<2x32xf32> -> vector<2x32xf32>
    %28 = arith.addf %25, %27 : vector<2x32xf32>
    %29 = math.tanh %28 : vector<2x32xf32>
    %c6 = arith.constant 6 : index
    %c0_23 = arith.constant 0 : index
    %30 = vector.load %arg9[%c6, %c0_23] : memref<16x32xf32, #tpu.memory_space<vmem>>, vector<2x32xf32>
    tpu.vector_store %arg9[%c6, %c0_23], %29 {strides = array<i32>} : memref<16x32xf32, #tpu.memory_space<vmem>>, vector<2x32xf32>,
    %31 = vector.extract_strided_slice %5 {offsets = [8, 0], sizes = [2, 32], strides = [1, 1]} : vector<16x32xf32> to vector<2x32xf32>
    %c0_24 = arith.constant 0 : index
    %c0_25 = arith.constant 0 : index
    %32 = vector.load %arg3[%c0_24, %c0_25] : memref<32x32xf32, #tpu.memory_space<vmem>>, vector<32x32xf32>
    %cst_26 = arith.constant dense<0.000000e+00> : vector<2x32xf32>
    %33 = tpu.matmul %29, %32, %cst_26 {dimension_numbers = #tpu.dot_dimension_numbers<[1], [0], [0], [1], [0, 0, 1, 1], [], []>} : vector<2x32xf32>, vector<32x32xf32>, vector<2x32xf32> -> vector<2x32xf32>
    %34 = arith.addf %31, %33 : vector<2x32xf32>
    %35 = math.tanh %34 : vector<2x32xf32>
    %c8 = arith.constant 8 : index
    %c0_27 = arith.constant 0 : index
    %36 = vector.load %arg9[%c8, %c0_27] : memref<16x32xf32, #tpu.memory_space<vmem>>, vector<2x32xf32>
    tpu.vector_store %arg9[%c8, %c0_27], %35 {strides = array<i32>} : memref<16x32xf32, #tpu.memory_space<vmem>>, vector<2x32xf32>,
    %37 = vector.extract_strided_slice %5 {offsets = [10, 0], sizes = [2, 32], strides = [1, 1]} : vector<16x32xf32> to vector<2x32xf32>
    %c0_28 = arith.constant 0 : index
    %c0_29 = arith.constant 0 : index
    %38 = vector.load %arg3[%c0_28, %c0_29] : memref<32x32xf32, #tpu.memory_space<vmem>>, vector<32x32xf32>
    %cst_30 = arith.constant dense<0.000000e+00> : vector<2x32xf32>
    %39 = tpu.matmul %35, %38, %cst_30 {dimension_numbers = #tpu.dot_dimension_numbers<[1], [0], [0], [1], [0, 0, 1, 1], [], []>} : vector<2x32xf32>, vector<32x32xf32>, vector<2x32xf32> -> vector<2x32xf32>
    %40 = arith.addf %37, %39 : vector<2x32xf32>
    %41 = math.tanh %40 : vector<2x32xf32>
    %c10 = arith.constant 10 : index
    %c0_31 = arith.constant 0 : index
    %42 = vector.load %arg9[%c10, %c0_31] : memref<16x32xf32, #tpu.memory_space<vmem>>, vector<2x32xf32>
    tpu.vector_store %arg9[%c10, %c0_31], %41 {strides = array<i32>} : memref<16x32xf32, #tpu.memory_space<vmem>>, vector<2x32xf32>,
    %43 = vector.extract_strided_slice %5 {offsets = [12, 0], sizes = [2, 32], strides = [1, 1]} : vector<16x32xf32> to vector<2x32xf32>
    %c0_32 = arith.constant 0 : index
    %c0_33 = arith.constant 0 : index
    %44 = vector.load %arg3[%c0_32, %c0_33] : memref<32x32xf32, #tpu.memory_space<vmem>>, vector<32x32xf32>
    %cst_34 = arith.constant dense<0.000000e+00> : vector<2x32xf32>
    %45 = tpu.matmul %41, %44, %cst_34 {dimension_numbers = #tpu.dot_dimension_numbers<[1], [0], [0], [1], [0, 0, 1, 1], [], []>} : vector<2x32xf32>, vector<32x32xf32>, vector<2x32xf32> -> vector<2x32xf32>
    %46 = arith.addf %43, %45 : vector<2x32xf32>
    %47 = math.tanh %46 : vector<2x32xf32>
    %c12 = arith.constant 12 : index
    %c0_35 = arith.constant 0 : index
    %48 = vector.load %arg9[%c12, %c0_35] : memref<16x32xf32, #tpu.memory_space<vmem>>, vector<2x32xf32>
    tpu.vector_store %arg9[%c12, %c0_35], %47 {strides = array<i32>} : memref<16x32xf32, #tpu.memory_space<vmem>>, vector<2x32xf32>,
    %49 = vector.extract_strided_slice %5 {offsets = [14, 0], sizes = [2, 32], strides = [1, 1]} : vector<16x32xf32> to vector<2x32xf32>
    %c0_36 = arith.constant 0 : index
    %c0_37 = arith.constant 0 : index
    %50 = vector.load %arg3[%c0_36, %c0_37] : memref<32x32xf32, #tpu.memory_space<vmem>>, vector<32x32xf32>
    %cst_38 = arith.constant dense<0.000000e+00> : vector<2x32xf32>
    %51 = tpu.matmul %47, %50, %cst_38 {dimension_numbers = #tpu.dot_dimension_numbers<[1], [0], [0], [1], [0, 0, 1, 1], [], []>} : vector<2x32xf32>, vector<32x32xf32>, vector<2x32xf32> -> vector<2x32xf32>
    %52 = arith.addf %49, %51 : vector<2x32xf32>
    %53 = math.tanh %52 : vector<2x32xf32>
    %c14 = arith.constant 14 : index
    %c0_39 = arith.constant 0 : index
    %54 = vector.load %arg9[%c14, %c0_39] : memref<16x32xf32, #tpu.memory_space<vmem>>, vector<2x32xf32>
    tpu.vector_store %arg9[%c14, %c0_39], %53 {strides = array<i32>} : memref<16x32xf32, #tpu.memory_space<vmem>>, vector<2x32xf32>,
    %c0_40 = arith.constant 0 : index
    %c0_41 = arith.constant 0 : index
    %55 = vector.load %arg8[%c0_40, %c0_41] : memref<2x32xf32, #tpu.memory_space<vmem>>, vector<2x32xf32>
    tpu.vector_store %arg8[%c0_40, %c0_41], %53 {strides = array<i32>} : memref<2x32xf32, #tpu.memory_space<vmem>>, vector<2x32xf32>,
    %c0_42 = arith.constant 0 : index
    %c0_43 = arith.constant 0 : index
    %56 = vector.load %arg9[%c0_42, %c0_43] : memref<16x32xf32, #tpu.memory_space<vmem>>, vector<16x32xf32>
    %c0_44 = arith.constant 0 : index
    %c0_45 = arith.constant 0 : index
    %57 = vector.load %arg5[%c0_44, %c0_45] : memref<32x8xf32, #tpu.memory_space<vmem>>, vector<32x8xf32>
    %cst_46 = arith.constant dense<0.000000e+00> : vector<16x8xf32>
    %58 = tpu.matmul %56, %57, %cst_46 {dimension_numbers = #tpu.dot_dimension_numbers<[1], [0], [0], [1], [0, 0, 1, 1], [], []>} : vector<16x32xf32>, vector<32x8xf32>, vector<16x8xf32> -> vector<16x8xf32>
    %c0_47 = arith.constant 0 : index
    %c0_48 = arith.constant 0 : index
    %59 = vector.load %arg6[%c0_47, %c0_48] : memref<1x8xf32, #tpu.memory_space<vmem>>, vector<1x8xf32>
    %60 = vector.broadcast %59 : vector<1x8xf32> to vector<16x8xf32>
    %61 = arith.addf %58, %60 : vector<16x8xf32>
    %c0_49 = arith.constant 0 : index
    %c0_50 = arith.constant 0 : index
    %62 = vector.load %arg7[%c0_49, %c0_50] : memref<16x8xf32, #tpu.memory_space<vmem>>, vector<16x8xf32>
    tpu.vector_store %arg7[%c0_49, %c0_50], %61 {strides = array<i32>} : memref<16x8xf32, #tpu.memory_space<vmem>>, vector<16x8xf32>,
    return
  }
}

</mosaic_0001>

<llo_original>
// kernel: tpu_custom_call.1
$region0: #{tpu_custom_call.1}
  #allocation0 [shape = 'u32[]', space=smem, size = 0x4, offset = 0x4, fixed_abs, tag = 'smem constant byte address 0x4 - core index']
  #allocation1 [shape = 'u32[144,128]{1,0:T(1,128)}', space=vmem, size = 0x12000, scoped, tag = 'internal scratch']
  #allocation2 [shape = 'f32[16,32]{1,0:T(8,128)}', space=vmem, size = 0x2000, scoped, tag = 'scratch operand']
  %s0 = inlined_call_operand.vmem [shape: f32[16,16], index: 0, kind: input, shape index: {}]
  %s1 = inlined_call_operand.vmem [shape: f32[2,32], index: 1, kind: input, shape index: {}]
  %s2 = inlined_call_operand.hbm [shape: f32[16,32], index: 2, kind: input, shape index: {}]
  %s3 = inlined_call_operand.vmem [shape: f32[32,32], index: 3, kind: input, shape index: {}]
  %s4 = inlined_call_operand.hbm [shape: f32[1,32], index: 4, kind: input, shape index: {}]
  %s5 = inlined_call_operand.vmem [shape: f32[32,8], index: 5, kind: input, shape index: {}]
  %s6 = inlined_call_operand.vmem [shape: f32[1,8], index: 6, kind: input, shape index: {}]
  %s7 = inlined_call_operand.vmem [shape: f32[16,8], index: 7, kind: output, shape index: {0}]
  %s8 = inlined_call_operand.hbm [shape: f32[2,32], index: 8, kind: output, shape index: {1}]
  %9 = xla_tuple %s7, %s8
  %s10 = sld [smem:[#allocation0]]
  $region54: #{tpu_custom_call.1} parent=0
    _
  %s12 = ssub.s32 1, %s10
  %s13 = scalar_select 0, %s12, %s10
  $region1: #{tpu_custom_call.1} parent=0
    #allocation3 [shape = 'u8[8192]{0}', space=vmem, size = 0x2000, scoped, tag = 'input window, operand 2, single buffered']
    #allocation4 [shape = 's32[1]{0}', space=sflag, size = 0x4, scoped, tag = 'scoped memory for tpu_custom_call.1']
    #allocation5 [shape = 's32[1]{0}', space=sflag, size = 0x4, scoped, tag = 'scoped memory for tpu_custom_call.1']
    #allocation6 [shape = 'u8[512]{0}', space=vmem, size = 0x400, scoped, tag = 'input window, operand 4, single buffered']
    #allocation7 [shape = 's32[1]{0}', space=sflag, size = 0x4, scoped, tag = 'scoped memory for tpu_custom_call.1']
    #allocation8 [shape = 'u8[1024]{0}', space=vmem, size = 0x400, scoped, tag = 'output window, operand 1, single buffered']
    %14 = vsyncpa [#allocation4], 0
    %15 = vsyncpa [#allocation7], 0
    %16 = vsyncpa [#allocation5], 0
    // Predicated region
    $region2: #{tpu_custom_call.1} parent=1 // pred_check
      _
    $region3: #{tpu_custom_call.1} parent=1 // pred_check_branch
      %18 = sbr.rel (0) target = $region5
    $region4: #{tpu_custom_call.1} parent=1 // pred_region
      _
    $region5: #{tpu_custom_call.1} parent=1 // pred_fallthru
      _
    // Predicated region
    $region6: #{tpu_custom_call.1} parent=1 // pred_check
      _
    $region7: #{tpu_custom_call.1} parent=1 // pred_check_branch
      %20 = sbr.rel (0) target = $region9
    $region8: #{tpu_custom_call.1} parent=1 // pred_region
      _
    $region9: #{tpu_custom_call.1} parent=1 // pred_fallthru
      _
    // Predicated region
    $region10: #{tpu_custom_call.1} parent=1 // pred_check
      _
    $region11: #{tpu_custom_call.1} parent=1 // pred_check_branch
      %22 = sbr.rel (0) target = $region13
    $region12: #{tpu_custom_call.1} parent=1 // pred_region
      %s24 = ssub.s32 256, 256
      %25 = vsyncadd [#allocation4], %s24
      %s26 = sshll.u32 [#allocation3], 4
      %s27 = int_to_ptr.vmem [resolvable:$true] %s26
      %32 = dma.hbm_to_vmem [thread:$0]  %s2, 256, %s27, [#allocation4], 128, 128, 8
    $region13: #{tpu_custom_call.1} parent=1 // pred_fallthru
      _
    // Predicated region
    $region14: #{tpu_custom_call.1} parent=1 // pred_check
      _
    $region15: #{tpu_custom_call.1} parent=1 // pred_check_branch
      %34 = sbr.rel (0) target = $region17
    $region16: #{tpu_custom_call.1} parent=1 // pred_region
      _
    $region17: #{tpu_custom_call.1} parent=1 // pred_fallthru
      _
    // Predicated region
    $region18: #{tpu_custom_call.1} parent=1 // pred_check
      _
    $region19: #{tpu_custom_call.1} parent=1 // pred_check_branch
      %36 = sbr.rel (0) target = $region21
    $region20: #{tpu_custom_call.1} parent=1 // pred_region
      %s38 = ssub.s32 16, 16
      %39 = vsyncadd [#allocation7], %s38
      %s41 = sshll.u32 [#allocation6], 4
      %s42 = int_to_ptr.vmem [resolvable:$true] %s41
      %44 = dma.hbm_to_vmem [thread:$0]  %s4, 16, %s42, [#allocation7]
    $region21: #{tpu_custom_call.1} parent=1 // pred_fallthru
      _
    // Predicated region
    $region22: #{tpu_custom_call.1} parent=1 // pred_check
      _
    $region23: #{tpu_custom_call.1} parent=1 // pred_check_branch
      %46 = sbr.rel (0) target = $region25
    $region24: #{tpu_custom_call.1} parent=1 // pred_region
      _
    $region25: #{tpu_custom_call.1} parent=1 // pred_fallthru
      _
    // Predicated region
    $region26: #{tpu_custom_call.1} parent=1 // pred_check
      _
    $region27: #{tpu_custom_call.1} parent=1 // pred_check_branch
      %48 = sbr.rel (0) target = $region29
    $region28: #{tpu_custom_call.1} parent=1 // pred_region
      _
    $region29: #{tpu_custom_call.1} parent=1 // pred_fallthru
      _
    // Predicated region
    $region30: #{tpu_custom_call.1} parent=1 // pred_check
      _
    $region31: #{tpu_custom_call.1} parent=1 // pred_check_branch
      %50 = sbr.rel (0) target = $region33
    $region32: #{tpu_custom_call.1} parent=1 // pred_region
      %51 = dma.done [#allocation4], 256
    $region33: #{tpu_custom_call.1} parent=1 // pred_fallthru
      _
    // Predicated region
    $region34: #{tpu_custom_call.1} parent=1 // pred_check
      _
    $region35: #{tpu_custom_call.1} parent=1 // pred_check_branch
      %53 = sbr.rel (0) target = $region37
    $region36: #{tpu_custom_call.1} parent=1 // pred_region
      %54 = dma.done [#allocation7], 16
    $region37: #{tpu_custom_call.1} parent=1 // pred_fallthru
      _
    %v55 = vld [vmem:[%s0] sm:$0xff]
    %v56 = vld [vmem:[%s0 + $0x8] sm:$0xff]
    %v57 = vld [vmem:[#allocation3] sm:$0xff]
    %v58 = vld [vmem:[#allocation3 + $0x8] sm:$0xff]
    %v59 = vld [vmem:[#allocation6] sm:$0x1]
    %v61 = vlaneseq
    %v62 = vshrl.u32 %v61, 7
    %v63 = vsub.s32 0, %v62
    %v64 = vrot.slane %v59, %v63
    %vm66 = vcmask 130048
    %v68 = vsel %vm66, %v55, 0
    %v71 = vsel %vm66, %v56, 0
    %73 = vmatprep.subr.mxu0 0.0
    %74 = vmatpush1.msra.mxu0 %v57
    %75 = vmatprep.subr.mxu0 0.0
    %76 = vmatpush1.msra.mxu0 %v58
    %77 = vmatprep.subr.mxu0 0.0
    %78 = vmatpush1.msra.mxu0 0.0
    %79 = vmatprep.subr.mxu0 0.0
    %80 = vmatpush1.msra.mxu0 0.0
    %81 = vmatprep.subr.mxu0 0.0
    %82 = vmatpush1.msra.mxu0 0.0
    %83 = vmatprep.subr.mxu0 0.0
    %84 = vmatpush1.msra.mxu0 0.0
    %85 = vmatprep.subr.mxu0 0.0
    %86 = vmatpush1.msra.mxu0 0.0
    %87 = vmatprep.subr.mxu0 0.0
    %88 = vmatpush1.msra.mxu0 0.0
    %89 = vmatprep.subr.mxu0 0.0
    %90 = vmatpush1.msra.mxu0 0.0
    %91 = vmatprep.subr.mxu0 0.0
    %92 = vmatpush1.msra.mxu0 0.0
    %93 = vmatprep.subr.mxu0 0.0
    %94 = vmatpush1.msra.mxu0 0.0
    %95 = vmatprep.subr.mxu0 0.0
    %96 = vmatpush1.msra.mxu0 0.0
    %97 = vmatprep.subr.mxu0 0.0
    %98 = vmatpush1.msra.mxu0 0.0
    %99 = vmatprep.subr.mxu0 0.0
    %100 = vmatpush1.msra.mxu0 0.0
    %101 = vmatprep.subr.mxu0 0.0
    %102 = vmatpush1.msra.mxu0 0.0
    %103 = vmatprep.subr.mxu0 0.0
    %104 = vmatpush1.msra.mxu0 0.0
    %105 = vmatprep.subr.mxu0 0.0
    %106 = vmatpush1.msra.mxu0 0.0
    %107 = vmatprep.subr.mxu0 0.0
    %108 = vmatpush1.msra.mxu0 0.0
    %109 = vmatprep.subr.mxu0 0.0
    %110 = vmatpush1.msra.mxu0 0.0
    %111 = vmatprep.subr.mxu0 0.0
    %112 = vmatpush1.msra.mxu0 0.0
    %113 = vmatprep.subr.mxu0 0.0
    %114 = vmatpush1.msra.mxu0 0.0
    %115 = vmatprep.subr.mxu0 0.0
    %116 = vmatpush1.msra.mxu0 0.0
    %117 = vmatprep.subr.mxu0 0.0
    %118 = vmatpush1.msra.mxu0 0.0
    %119 = vmatprep.subr.mxu0 0.0
    %120 = vmatpush1.msra.mxu0 0.0
    %121 = vmatprep.subr.mxu0 0.0
    %122 = vmatpush1.msra.mxu0 0.0
    %123 = vmatprep.subr.mxu0 0.0
    %124 = vmatpush1.msra.mxu0 0.0
    %125 = vmatprep.subr.mxu0 0.0
    %126 = vmatpush1.msra.mxu0 0.0
    %127 = vmatprep.subr.mxu0 0.0
    %128 = vmatpush1.msra.mxu0 0.0
    %129 = vmatprep.subr.mxu0 0.0
    %130 = vmatpush1.msra.mxu0 0.0
    %131 = vmatprep.subr.mxu0 0.0
    %132 = vmatpush1.msra.mxu0 0.0
    %133 = vmatprep.subr.mxu0 0.0
    %134 = vmatpush1.msra.mxu0 0.0
    %135 = vmatprep.subr.mxu0 0.0
    %136 = vmatpush1.msra.mxu0 0.0
    %137 = vmatprep.mubr.f32.mxu0 0.0
    %138 = vmatmul.mubr.f32.gmra.mrb[0].mxu0 %v68
    %v139 = vpop.f32.mrb[0].mxu0
    %v140 = vadd.f32 %v64, %v139
    %v141 = vpop.f32.mrb[0].mxu0
    %142 = vmatprep.mubr.f32.mxu0 0.0
    %143 = vmatmul.mubr.f32.gmra.mrb[0].mxu0 %v71
    %v144 = vpop.f32.mrb[0].mxu0
    %v145 = vadd.f32 %v64, %v144
    %v146 = vpop.f32.mrb[0].mxu0
    %147 = vdwg.mxu0
    %v148 = vld [vmem:[%s1] sm:$0x3]
    %v149 = vld [vmem:[%s3] sm:$0xff]
    %v150 = vld [vmem:[%s3 + $0x8] sm:$0xff]
    %v151 = vld [vmem:[%s3 + $0x10] sm:$0xff]
    %v152 = vld [vmem:[%s3 + $0x18] sm:$0xff]
    %vm153 = vcmask 261120
    %v155 = vsel %vm153, %v148, 0
    %157 = vmatprep.subr.mxu0 0.0
    %158 = vmatpush1.msra.mxu0 %v149
    %159 = vmatprep.subr.mxu0 0.0
    %160 = vmatpush1.msra.mxu0 %v150
    %161 = vmatprep.subr.mxu0 0.0
    %162 = vmatpush1.msra.mxu0 %v151
    %163 = vmatprep.subr.mxu0 0.0
    %164 = vmatpush1.msra.mxu0 %v152
    %165 = vmatprep.subr.mxu0 0.0
    %166 = vmatpush1.msra.mxu0 0.0
    %167 = vmatprep.subr.mxu0 0.0
    %168 = vmatpush1.msra.mxu0 0.0
    %169 = vmatprep.subr.mxu0 0.0
    %170 = vmatpush1.msra.mxu0 0.0
    %171 = vmatprep.subr.mxu0 0.0
    %172 = vmatpush1.msra.mxu0 0.0
    %173 = vmatprep.subr.mxu0 0.0
    %174 = vmatpush1.msra.mxu0 0.0
    %175 = vmatprep.subr.mxu0 0.0
    %176 = vmatpush1.msra.mxu0 0.0
    %177 = vmatprep.subr.mxu0 0.0
    %178 = vmatpush1.msra.mxu0 0.0
    %179 = vmatprep.subr.mxu0 0.0
    %180 = vmatpush1.msra.mxu0 0.0
    %181 = vmatprep.subr.mxu0 0.0
    %182 = vmatpush1.msra.mxu0 0.0
    %183 = vmatprep.subr.mxu0 0.0
    %184 = vmatpush1.msra.mxu0 0.0
    %185 = vmatprep.subr.mxu0 0.0
    %186 = vmatpush1.msra.mxu0 0.0
    %187 = vmatprep.subr.mxu0 0.0
    %188 = vmatpush1.msra.mxu0 0.0
    %189 = vmatprep.subr.mxu0 0.0
    %190 = vmatpush1.msra.mxu0 0.0
    %191 = vmatprep.subr.mxu0 0.0
    %192 = vmatpush1.msra.mxu0 0.0
    %193 = vmatprep.subr.mxu0 0.0
    %194 = vmatpush1.msra.mxu0 0.0
    %195 = vmatprep.subr.mxu0 0.0
    %196 = vmatpush1.msra.mxu0 0.0
    %197 = vmatprep.subr.mxu0 0.0
    %198 = vmatpush1.msra.mxu0 0.0
    %199 = vmatprep.subr.mxu0 0.0
    %200 = vmatpush1.msra.mxu0 0.0
    %201 = vmatprep.subr.mxu0 0.0
    %202 = vmatpush1.msra.mxu0 0.0
    %203 = vmatprep.subr.mxu0 0.0
    %204 = vmatpush1.msra.mxu0 0.0
    %205 = vmatprep.subr.mxu0 0.0
    %206 = vmatpush1.msra.mxu0 0.0
    %207 = vmatprep.subr.mxu0 0.0
    %208 = vmatpush1.msra.mxu0 0.0
    %209 = vmatprep.subr.mxu0 0.0
    %210 = vmatpush1.msra.mxu0 0.0
    %211 = vmatprep.subr.mxu0 0.0
    %212 = vmatpush1.msra.mxu0 0.0
    %213 = vmatprep.subr.mxu0 0.0
    %214 = vmatpush1.msra.mxu0 0.0
    %215 = vmatprep.subr.mxu0 0.0
    %216 = vmatpush1.msra.mxu0 0.0
    %217 = vmatprep.subr.mxu0 0.0
    %218 = vmatpush1.msra.mxu0 0.0
    %219 = vmatprep.subr.mxu0 0.0
    %220 = vmatpush1.msra.mxu0 0.0
    %221 = vmatprep.mubr.f32.mxu0 0.0
    %222 = vmatmul.mubr.f32.gmra.mrb[0].mxu0 %v155
    %v223 = vpop.f32.mrb[0].mxu0
    %v224 = vadd.f32 0.0, %v223
    %v225 = vpop.f32.mrb[0].mxu0
    %226 = vdwg.mxu0
    %v227 = vadd.f32 %v140, %v224
    %v228 = vtanh.pop %v227
    %vm229 = vcmask 254976
    %230 = vst.msk [vmem:[#allocation2] sm:$0x3] %vm229, %v228
    %v231 = vld [vmem:[%s3] sm:$0xff]
    %v232 = vld [vmem:[%s3 + $0x8] sm:$0xff]
    %v233 = vld [vmem:[%s3 + $0x10] sm:$0xff]
    %v234 = vld [vmem:[%s3 + $0x18] sm:$0xff]
    %v236 = vsel %vm153, %v228, 0
    %238 = vmatprep.subr.mxu0 0.0
    %239 = vmatpush1.msra.mxu0 %v231
    %240 = vmatprep.subr.mxu0 0.0
    %241 = vmatpush1.msra.mxu0 %v232
    %242 = vmatprep.subr.mxu0 0.0
    %243 = vmatpush1.msra.mxu0 %v233
    %244 = vmatprep.subr.mxu0 0.0
    %245 = vmatpush1.msra.mxu0 %v234
    %246 = vmatprep.subr.mxu0 0.0
    %247 = vmatpush1.msra.mxu0 0.0
    %248 = vmatprep.subr.mxu0 0.0
    %249 = vmatpush1.msra.mxu0 0.0
    %250 = vmatprep.subr.mxu0 0.0
    %251 = vmatpush1.msra.mxu0 0.0
    %252 = vmatprep.subr.mxu0 0.0
    %253 = vmatpush1.msra.mxu0 0.0
    %254 = vmatprep.subr.mxu0 0.0
    %255 = vmatpush1.msra.mxu0 0.0
    %256 = vmatprep.subr.mxu0 0.0
    %257 = vmatpush1.msra.mxu0 0.0
    %258 = vmatprep.subr.mxu0 0.0
    %259 = vmatpush1.msra.mxu0 0.0
    %260 = vmatprep.subr.mxu0 0.0
    %261 = vmatpush1.msra.mxu0 0.0
    %262 = vmatprep.subr.mxu0 0.0
    %263 = vmatpush1.msra.mxu0 0.0
    %264 = vmatprep.subr.mxu0 0.0
    %265 = vmatpush1.msra.mxu0 0.0
    %266 = vmatprep.subr.mxu0 0.0
    %267 = vmatpush1.msra.mxu0 0.0
    %268 = vmatprep.subr.mxu0 0.0
    %269 = vmatpush1.msra.mxu0 0.0
    %270 = vmatprep.subr.mxu0 0.0
    %271 = vmatpush1.msra.mxu0 0.0
    %272 = vmatprep.subr.mxu0 0.0
    %273 = vmatpush1.msra.mxu0 0.0
    %274 = vmatprep.subr.mxu0 0.0
    %275 = vmatpush1.msra.mxu0 0.0
    %276 = vmatprep.subr.mxu0 0.0
    %277 = vmatpush1.msra.mxu0 0.0
    %278 = vmatprep.subr.mxu0 0.0
    %279 = vmatpush1.msra.mxu0 0.0
    %280 = vmatprep.subr.mxu0 0.0
    %281 = vmatpush1.msra.mxu0 0.0
    %282 = vmatprep.subr.mxu0 0.0
    %283 = vmatpush1.msra.mxu0 0.0
    %284 = vmatprep.subr.mxu0 0.0
    %285 = vmatpush1.msra.mxu0 0.0
    %286 = vmatprep.subr.mxu0 0.0
    %287 = vmatpush1.msra.mxu0 0.0
    %288 = vmatprep.subr.mxu0 0.0
    %289 = vmatpush1.msra.mxu0 0.0
    %290 = vmatprep.subr.mxu0 0.0
    %291 = vmatpush1.msra.mxu0 0.0
    %292 = vmatprep.subr.mxu0 0.0
    %293 = vmatpush1.msra.mxu0 0.0
    %294 = vmatprep.subr.mxu0 0.0
    %295 = vmatpush1.msra.mxu0 0.0
    %296 = vmatprep.subr.mxu0 0.0
    %297 = vmatpush1.msra.mxu0 0.0
    %298 = vmatprep.subr.mxu0 0.0
    %299 = vmatpush1.msra.mxu0 0.0
    %300 = vmatprep.subr.mxu0 0.0
    %301 = vmatpush1.msra.mxu0 0.0
    %302 = vmatprep.mubr.f32.mxu0 0.0
    %303 = vmatmul.mubr.f32.gmra.mrb[0].mxu0 %v236
    %v304 = vpop.f32.mrb[0].mxu0
    %v305 = vadd.f32 0.0, %v304
    %v306 = vpop.f32.mrb[0].mxu0
    %307 = vdwg.mxu0
    %v309 = vrot.slane %v305, 6
    %v311 = vadd.f32 %v140, %v309
    %v312 = vtanh.pop %v311
    %vm313 = vcmask 257026
    %314 = vst.msk [vmem:[#allocation2] sm:$0xc] %vm313, %v312
    %v315 = vld [vmem:[%s3] sm:$0xff]
    %v316 = vld [vmem:[%s3 + $0x8] sm:$0xff]
    %v317 = vld [vmem:[%s3 + $0x10] sm:$0xff]
    %v318 = vld [vmem:[%s3 + $0x18] sm:$0xff]
    %v320 = vrot.slane %v312, 2
    %v321 = vsel %vm153, %v320, 0
    %323 = vmatprep.subr.mxu0 0.0
    %324 = vmatpush1.msra.mxu0 %v315
    %325 = vmatprep.subr.mxu0 0.0
    %326 = vmatpush1.msra.mxu0 %v316
    %327 = vmatprep.subr.mxu0 0.0
    %328 = vmatpush1.msra.mxu0 %v317
    %329 = vmatprep.subr.mxu0 0.0
    %330 = vmatpush1.msra.mxu0 %v318
    %331 = vmatprep.subr.mxu0 0.0
    %332 = vmatpush1.msra.mxu0 0.0
    %333 = vmatprep.subr.mxu0 0.0
    %334 = vmatpush1.msra.mxu0 0.0
    %335 = vmatprep.subr.mxu0 0.0
    %336 = vmatpush1.msra.mxu0 0.0
    %337 = vmatprep.subr.mxu0 0.0
    %338 = vmatpush1.msra.mxu0 0.0
    %339 = vmatprep.subr.mxu0 0.0
    %340 = vmatpush1.msra.mxu0 0.0
    %341 = vmatprep.subr.mxu0 0.0
    %342 = vmatpush1.msra.mxu0 0.0
    %343 = vmatprep.subr.mxu0 0.0
    %344 = vmatpush1.msra.mxu0 0.0
    %345 = vmatprep.subr.mxu0 0.0
    %346 = vmatpush1.msra.mxu0 0.0
    %347 = vmatprep.subr.mxu0 0.0
    %348 = vmatpush1.msra.mxu0 0.0
    %349 = vmatprep.subr.mxu0 0.0
    %350 = vmatpush1.msra.mxu0 0.0
    %351 = vmatprep.subr.mxu0 0.0
    %352 = vmatpush1.msra.mxu0 0.0
    %353 = vmatprep.subr.mxu0 0.0
    %354 = vmatpush1.msra.mxu0 0.0
    %355 = vmatprep.subr.mxu0 0.0
    %356 = vmatpush1.msra.mxu0 0.0
    %357 = vmatprep.subr.mxu0 0.0
    %358 = vmatpush1.msra.mxu0 0.0
    %359 = vmatprep.subr.mxu0 0.0
    %360 = vmatpush1.msra.mxu0 0.0
    %361 = vmatprep.subr.mxu0 0.0
    %362 = vmatpush1.msra.mxu0 0.0
    %363 = vmatprep.subr.mxu0 0.0
    %364 = vmatpush1.msra.mxu0 0.0
    %365 = vmatprep.subr.mxu0 0.0
    %366 = vmatpush1.msra.mxu0 0.0
    %367 = vmatprep.subr.mxu0 0.0
    %368 = vmatpush1.msra.mxu0 0.0
    %369 = vmatprep.subr.mxu0 0.0
    %370 = vmatpush1.msra.mxu0 0.0
    %371 = vmatprep.subr.mxu0 0.0
    %372 = vmatpush1.msra.mxu0 0.0
    %373 = vmatprep.subr.mxu0 0.0
    %374 = vmatpush1.msra.mxu0 0.0
    %375 = vmatprep.subr.mxu0 0.0
    %376 = vmatpush1.msra.mxu0 0.0
    %377 = vmatprep.subr.mxu0 0.0
    %378 = vmatpush1.msra.mxu0 0.0
    %379 = vmatprep.subr.mxu0 0.0
    %380 = vmatpush1.msra.mxu0 0.0
    %381 = vmatprep.subr.mxu0 0.0
    %382 = vmatpush1.msra.mxu0 0.0
    %383 = vmatprep.subr.mxu0 0.0
    %384 = vmatpush1.msra.mxu0 0.0
    %385 = vmatprep.subr.mxu0 0.0
    %386 = vmatpush1.msra.mxu0 0.0
    %387 = vmatprep.mubr.f32.mxu0 0.0
    %388 = vmatmul.mubr.f32.gmra.mrb[0].mxu0 %v321
    %v389 = vpop.f32.mrb[0].mxu0
    %v390 = vadd.f32 0.0, %v389
    %v391 = vpop.f32.mrb[0].mxu0
    %392 = vdwg.mxu0
    %v394 = vrot.slane %v390, 4
    %v396 = vadd.f32 %v140, %v394
    %v397 = vtanh.pop %v396
    %vm398 = vcmask 259076
    %399 = vst.msk [vmem:[#allocation2] sm:$0x30] %vm398, %v397
    %v400 = vld [vmem:[%s3] sm:$0xff]
    %v401 = vld [vmem:[%s3 + $0x8] sm:$0xff]
    %v402 = vld [vmem:[%s3 + $0x10] sm:$0xff]
    %v403 = vld [vmem:[%s3 + $0x18] sm:$0xff]
    %v405 = vrot.slane %v397, 4
    %v406 = vsel %vm153, %v405, 0
    %408 = vmatprep.subr.mxu0 0.0
    %409 = vmatpush1.msra.mxu0 %v400
    %410 = vmatprep.subr.mxu0 0.0
    %411 = vmatpush1.msra.mxu0 %v401
    %412 = vmatprep.subr.mxu0 0.0
    %413 = vmatpush1.msra.mxu0 %v402
    %414 = vmatprep.subr.mxu0 0.0
    %415 = vmatpush1.msra.mxu0 %v403
    %416 = vmatprep.subr.mxu0 0.0
    %417 = vmatpush1.msra.mxu0 0.0
    %418 = vmatprep.subr.mxu0 0.0
    %419 = vmatpush1.msra.mxu0 0.0
    %420 = vmatprep.subr.mxu0 0.0
    %421 = vmatpush1.msra.mxu0 0.0
    %422 = vmatprep.subr.mxu0 0.0
    %423 = vmatpush1.msra.mxu0 0.0
    %424 = vmatprep.subr.mxu0 0.0
    %425 = vmatpush1.msra.mxu0 0.0
    %426 = vmatprep.subr.mxu0 0.0
    %427 = vmatpush1.msra.mxu0 0.0
    %428 = vmatprep.subr.mxu0 0.0
    %429 = vmatpush1.msra.mxu0 0.0
    %430 = vmatprep.subr.mxu0 0.0
    %431 = vmatpush1.msra.mxu0 0.0
    %432 = vmatprep.subr.mxu0 0.0
    %433 = vmatpush1.msra.mxu0 0.0
    %434 = vmatprep.subr.mxu0 0.0
    %435 = vmatpush1.msra.mxu0 0.0
    %436 = vmatprep.subr.mxu0 0.0
    %437 = vmatpush1.msra.mxu0 0.0
    %438 = vmatprep.subr.mxu0 0.0
    %439 = vmatpush1.msra.mxu0 0.0
    %440 = vmatprep.subr.mxu0 0.0
    %441 = vmatpush1.msra.mxu0 0.0
    %442 = vmatprep.subr.mxu0 0.0
    %443 = vmatpush1.msra.mxu0 0.0
    %444 = vmatprep.subr.mxu0 0.0
    %445 = vmatpush1.msra.mxu0 0.0
    %446 = vmatprep.subr.mxu0 0.0
    %447 = vmatpush1.msra.mxu0 0.0
    %448 = vmatprep.subr.mxu0 0.0
    %449 = vmatpush1.msra.mxu0 0.0
    %450 = vmatprep.subr.mxu0 0.0
    %451 = vmatpush1.msra.mxu0 0.0
    %452 = vmatprep.subr.mxu0 0.0
    %453 = vmatpush1.msra.mxu0 0.0
    %454 = vmatprep.subr.mxu0 0.0
    %455 = vmatpush1.msra.mxu0 0.0
    %456 = vmatprep.subr.mxu0 0.0
    %457 = vmatpush1.msra.mxu0 0.0
    %458 = vmatprep.subr.mxu0 0.0
    %459 = vmatpush1.msra.mxu0 0.0
    %460 = vmatprep.subr.mxu0 0.0
    %461 = vmatpush1.msra.mxu0 0.0
    %462 = vmatprep.subr.mxu0 0.0
    %463 = vmatpush1.msra.mxu0 0.0
    %464 = vmatprep.subr.mxu0 0.0
    %465 = vmatpush1.msra.mxu0 0.0
    %466 = vmatprep.subr.mxu0 0.0
    %467 = vmatpush1.msra.mxu0 0.0
    %468 = vmatprep.subr.mxu0 0.0
    %469 = vmatpush1.msra.mxu0 0.0
    %470 = vmatprep.subr.mxu0 0.0
    %471 = vmatpush1.msra.mxu0 0.0
    %472 = vmatprep.mubr.f32.mxu0 0.0
    %473 = vmatmul.mubr.f32.gmra.mrb[0].mxu0 %v406
    %v474 = vpop.f32.mrb[0].mxu0
    %v475 = vadd.f32 0.0, %v474
    %v476 = vpop.f32.mrb[0].mxu0
    %477 = vdwg.mxu0
    %v479 = vrot.slane %v475, 2
    %v481 = vadd.f32 %v140, %v479
    %v482 = vtanh.pop %v481
    %vm483 = vcmask 261126
    %484 = vst.msk [vmem:[#allocation2] sm:$0xc0] %vm483, %v482
    %v485 = vld [vmem:[%s3] sm:$0xff]
    %v486 = vld [vmem:[%s3 + $0x8] sm:$0xff]
    %v487 = vld [vmem:[%s3 + $0x10] sm:$0xff]
    %v488 = vld [vmem:[%s3 + $0x18] sm:$0xff]
    %v490 = vrot.slane %v482, 6
    %v491 = vsel %vm153, %v490, 0
    %493 = vmatprep.subr.mxu0 0.0
    %494 = vmatpush1.msra.mxu0 %v485
    %495 = vmatprep.subr.mxu0 0.0
    %496 = vmatpush1.msra.mxu0 %v486
    %497 = vmatprep.subr.mxu0 0.0
    %498 = vmatpush1.msra.mxu0 %v487
    %499 = vmatprep.subr.mxu0 0.0
    %500 = vmatpush1.msra.mxu0 %v488
    %501 = vmatprep.subr.mxu0 0.0
    %502 = vmatpush1.msra.mxu0 0.0
    %503 = vmatprep.subr.mxu0 0.0
    %504 = vmatpush1.msra.mxu0 0.0
    %505 = vmatprep.subr.mxu0 0.0
    %506 = vmatpush1.msra.mxu0 0.0
    %507 = vmatprep.subr.mxu0 0.0
    %508 = vmatpush1.msra.mxu0 0.0
    %509 = vmatprep.subr.mxu0 0.0
    %510 = vmatpush1.msra.mxu0 0.0
    %511 = vmatprep.subr.mxu0 0.0
    %512 = vmatpush1.msra.mxu0 0.0
    %513 = vmatprep.subr.mxu0 0.0
    %514 = vmatpush1.msra.mxu0 0.0
    %515 = vmatprep.subr.mxu0 0.0
    %516 = vmatpush1.msra.mxu0 0.0
    %517 = vmatprep.subr.mxu0 0.0
    %518 = vmatpush1.msra.mxu0 0.0
    %519 = vmatprep.subr.mxu0 0.0
    %520 = vmatpush1.msra.mxu0 0.0
    %521 = vmatprep.subr.mxu0 0.0
    %522 = vmatpush1.msra.mxu0 0.0
    %523 = vmatprep.subr.mxu0 0.0
    %524 = vmatpush1.msra.mxu0 0.0
    %525 = vmatprep.subr.mxu0 0.0
    %526 = vmatpush1.msra.mxu0 0.0
    %527 = vmatprep.subr.mxu0 0.0
    %528 = vmatpush1.msra.mxu0 0.0
    %529 = vmatprep.subr.mxu0 0.0
    %530 = vmatpush1.msra.mxu0 0.0
    %531 = vmatprep.subr.mxu0 0.0
    %532 = vmatpush1.msra.mxu0 0.0
    %533 = vmatprep.subr.mxu0 0.0
    %534 = vmatpush1.msra.mxu0 0.0
    %535 = vmatprep.subr.mxu0 0.0
    %536 = vmatpush1.msra.mxu0 0.0
    %537 = vmatprep.subr.mxu0 0.0
    %538 = vmatpush1.msra.mxu0 0.0
    %539 = vmatprep.subr.mxu0 0.0
    %540 = vmatpush1.msra.mxu0 0.0
    %541 = vmatprep.subr.mxu0 0.0
    %542 = vmatpush1.msra.mxu0 0.0
    %543 = vmatprep.subr.mxu0 0.0
    %544 = vmatpush1.msra.mxu0 0.0
    %545 = vmatprep.subr.mxu0 0.0
    %546 = vmatpush1.msra.mxu0 0.0
    %547 = vmatprep.subr.mxu0 0.0
    %548 = vmatpush1.msra.mxu0 0.0
    %549 = vmatprep.subr.mxu0 0.0
    %550 = vmatpush1.msra.mxu0 0.0
    %551 = vmatprep.subr.mxu0 0.0
    %552 = vmatpush1.msra.mxu0 0.0
    %553 = vmatprep.subr.mxu0 0.0
    %554 = vmatpush1.msra.mxu0 0.0
    %555 = vmatprep.subr.mxu0 0.0
    %556 = vmatpush1.msra.mxu0 0.0
    %557 = vmatprep.mubr.f32.mxu0 0.0
    %558 = vmatmul.mubr.f32.gmra.mrb[0].mxu0 %v491
    %v559 = vpop.f32.mrb[0].mxu0
    %v560 = vadd.f32 0.0, %v559
    %v561 = vpop.f32.mrb[0].mxu0
    %562 = vdwg.mxu0
    %v563 = vadd.f32 %v145, %v560
    %v564 = vtanh.pop %v563
    %565 = vst.msk [vmem:[#allocation2 + $0x8] sm:$0x3] %vm229, %v564
    %v566 = vld [vmem:[%s3] sm:$0xff]
    %v567 = vld [vmem:[%s3 + $0x8] sm:$0xff]
    %v568 = vld [vmem:[%s3 + $0x10] sm:$0xff]
    %v569 = vld [vmem:[%s3 + $0x18] sm:$0xff]
    %v571 = vsel %vm153, %v564, 0
    %573 = vmatprep.subr.mxu0 0.0
    %574 = vmatpush1.msra.mxu0 %v566
    %575 = vmatprep.subr.mxu0 0.0
    %576 = vmatpush1.msra.mxu0 %v567
    %577 = vmatprep.subr.mxu0 0.0
    %578 = vmatpush1.msra.mxu0 %v568
    %579 = vmatprep.subr.mxu0 0.0
    %580 = vmatpush1.msra.mxu0 %v569
    %581 = vmatprep.subr.mxu0 0.0
    %582 = vmatpush1.msra.mxu0 0.0
    %583 = vmatprep.subr.mxu0 0.0
    %584 = vmatpush1.msra.mxu0 0.0
    %585 = vmatprep.subr.mxu0 0.0
    %586 = vmatpush1.msra.mxu0 0.0
    %587 = vmatprep.subr.mxu0 0.0
    %588 = vmatpush1.msra.mxu0 0.0
    %589 = vmatprep.subr.mxu0 0.0
    %590 = vmatpush1.msra.mxu0 0.0
    %591 = vmatprep.subr.mxu0 0.0
    %592 = vmatpush1.msra.mxu0 0.0
    %593 = vmatprep.subr.mxu0 0.0
    %594 = vmatpush1.msra.mxu0 0.0
    %595 = vmatprep.subr.mxu0 0.0
    %596 = vmatpush1.msra.mxu0 0.0
    %597 = vmatprep.subr.mxu0 0.0
    %598 = vmatpush1.msra.mxu0 0.0
    %599 = vmatprep.subr.mxu0 0.0
    %600 = vmatpush1.msra.mxu0 0.0
    %601 = vmatprep.subr.mxu0 0.0
    %602 = vmatpush1.msra.mxu0 0.0
    %603 = vmatprep.subr.mxu0 0.0
    %604 = vmatpush1.msra.mxu0 0.0
    %605 = vmatprep.subr.mxu0 0.0
    %606 = vmatpush1.msra.mxu0 0.0
    %607 = vmatprep.subr.mxu0 0.0
    %608 = vmatpush1.msra.mxu0 0.0
    %609 = vmatprep.subr.mxu0 0.0
    %610 = vmatpush1.msra.mxu0 0.0
    %611 = vmatprep.subr.mxu0 0.0
    %612 = vmatpush1.msra.mxu0 0.0
    %613 = vmatprep.subr.mxu0 0.0
    %614 = vmatpush1.msra.mxu0 0.0
    %615 = vmatprep.subr.mxu0 0.0
    %616 = vmatpush1.msra.mxu0 0.0
    %617 = vmatprep.subr.mxu0 0.0
    %618 = vmatpush1.msra.mxu0 0.0
    %619 = vmatprep.subr.mxu0 0.0
    %620 = vmatpush1.msra.mxu0 0.0
    %621 = vmatprep.subr.mxu0 0.0
    %622 = vmatpush1.msra.mxu0 0.0
    %623 = vmatprep.subr.mxu0 0.0
    %624 = vmatpush1.msra.mxu0 0.0
    %625 = vmatprep.subr.mxu0 0.0
    %626 = vmatpush1.msra.mxu0 0.0
    %627 = vmatprep.subr.mxu0 0.0
    %628 = vmatpush1.msra.mxu0 0.0
    %629 = vmatprep.subr.mxu0 0.0
    %630 = vmatpush1.msra.mxu0 0.0
    %631 = vmatprep.subr.mxu0 0.0
    %632 = vmatpush1.msra.mxu0 0.0
    %633 = vmatprep.subr.mxu0 0.0
    %634 = vmatpush1.msra.mxu0 0.0
    %635 = vmatprep.subr.mxu0 0.0
    %636 = vmatpush1.msra.mxu0 0.0
    %637 = vmatprep.mubr.f32.mxu0 0.0
    %638 = vmatmul.mubr.f32.gmra.mrb[0].mxu0 %v571
    %v639 = vpop.f32.mrb[0].mxu0
    %v640 = vadd.f32 0.0, %v639
    %v641 = vpop.f32.mrb[0].mxu0
    %642 = vdwg.mxu0
    %v644 = vrot.slane %v640, 6
    %v646 = vadd.f32 %v145, %v644
    %v647 = vtanh.pop %v646
    %648 = vst.msk [vmem:[#allocation2 + $0x8] sm:$0xc] %vm313, %v647
    %v649 = vld [vmem:[%s3] sm:$0xff]
    %v650 = vld [vmem:[%s3 + $0x8] sm:$0xff]
    %v651 = vld [vmem:[%s3 + $0x10] sm:$0xff]
    %v652 = vld [vmem:[%s3 + $0x18] sm:$0xff]
    %v654 = vrot.slane %v647, 2
    %v655 = vsel %vm153, %v654, 0
    %657 = vmatprep.subr.mxu0 0.0
    %658 = vmatpush1.msra.mxu0 %v649
    %659 = vmatprep.subr.mxu0 0.0
    %660 = vmatpush1.msra.mxu0 %v650
    %661 = vmatprep.subr.mxu0 0.0
    %662 = vmatpush1.msra.mxu0 %v651
    %663 = vmatprep.subr.mxu0 0.0
    %664 = vmatpush1.msra.mxu0 %v652
    %665 = vmatprep.subr.mxu0 0.0
    %666 = vmatpush1.msra.mxu0 0.0
    %667 = vmatprep.subr.mxu0 0.0
    %668 = vmatpush1.msra.mxu0 0.0
    %669 = vmatprep.subr.mxu0 0.0
    %670 = vmatpush1.msra.mxu0 0.0
    %671 = vmatprep.subr.mxu0 0.0
    %672 = vmatpush1.msra.mxu0 0.0
    %673 = vmatprep.subr.mxu0 0.0
    %674 = vmatpush1.msra.mxu0 0.0
    %675 = vmatprep.subr.mxu0 0.0
    %676 = vmatpush1.msra.mxu0 0.0
    %677 = vmatprep.subr.mxu0 0.0
    %678 = vmatpush1.msra.mxu0 0.0
    %679 = vmatprep.subr.mxu0 0.0
    %680 = vmatpush1.msra.mxu0 0.0
    %681 = vmatprep.subr.mxu0 0.0
    %682 = vmatpush1.msra.mxu0 0.0
    %683 = vmatprep.subr.mxu0 0.0
    %684 = vmatpush1.msra.mxu0 0.0
    %685 = vmatprep.subr.mxu0 0.0
    %686 = vmatpush1.msra.mxu0 0.0
    %687 = vmatprep.subr.mxu0 0.0
    %688 = vmatpush1.msra.mxu0 0.0
    %689 = vmatprep.subr.mxu0 0.0
    %690 = vmatpush1.msra.mxu0 0.0
    %691 = vmatprep.subr.mxu0 0.0
    %692 = vmatpush1.msra.mxu0 0.0
    %693 = vmatprep.subr.mxu0 0.0
    %694 = vmatpush1.msra.mxu0 0.0
    %695 = vmatprep.subr.mxu0 0.0
    %696 = vmatpush1.msra.mxu0 0.0
    %697 = vmatprep.subr.mxu0 0.0
    %698 = vmatpush1.msra.mxu0 0.0
    %699 = vmatprep.subr.mxu0 0.0
    %700 = vmatpush1.msra.mxu0 0.0
    %701 = vmatprep.subr.mxu0 0.0
    %702 = vmatpush1.msra.mxu0 0.0
    %703 = vmatprep.subr.mxu0 0.0
    %704 = vmatpush1.msra.mxu0 0.0
    %705 = vmatprep.subr.mxu0 0.0
    %706 = vmatpush1.msra.mxu0 0.0
    %707 = vmatprep.subr.mxu0 0.0
    %708 = vmatpush1.msra.mxu0 0.0
    %709 = vmatprep.subr.mxu0 0.0
    %710 = vmatpush1.msra.mxu0 0.0
    %711 = vmatprep.subr.mxu0 0.0
    %712 = vmatpush1.msra.mxu0 0.0
    %713 = vmatprep.subr.mxu0 0.0
    %714 = vmatpush1.msra.mxu0 0.0
    %715 = vmatprep.subr.mxu0 0.0
    %716 = vmatpush1.msra.mxu0 0.0
    %717 = vmatprep.subr.mxu0 0.0
    %718 = vmatpush1.msra.mxu0 0.0
    %719 = vmatprep.subr.mxu0 0.0
    %720 = vmatpush1.msra.mxu0 0.0
    %721 = vmatprep.mubr.f32.mxu0 0.0
    %722 = vmatmul.mubr.f32.gmra.mrb[0].mxu0 %v655
    %v723 = vpop.f32.mrb[0].mxu0
    %v724 = vadd.f32 0.0, %v723
    %v725 = vpop.f32.mrb[0].mxu0
    %726 = vdwg.mxu0
    %v728 = vrot.slane %v724, 4
    %v730 = vadd.f32 %v145, %v728
    %v731 = vtanh.pop %v730
    %732 = vst.msk [vmem:[#allocation2 + $0x8] sm:$0x30] %vm398, %v731
    %v733 = vld [vmem:[%s3] sm:$0xff]
    %v734 = vld [vmem:[%s3 + $0x8] sm:$0xff]
    %v735 = vld [vmem:[%s3 + $0x10] sm:$0xff]
    %v736 = vld [vmem:[%s3 + $0x18] sm:$0xff]
    %v738 = vrot.slane %v731, 4
    %v739 = vsel %vm153, %v738, 0
    %741 = vmatprep.subr.mxu0 0.0
    %742 = vmatpush1.msra.mxu0 %v733
    %743 = vmatprep.subr.mxu0 0.0
    %744 = vmatpush1.msra.mxu0 %v734
    %745 = vmatprep.subr.mxu0 0.0
    %746 = vmatpush1.msra.mxu0 %v735
    %747 = vmatprep.subr.mxu0 0.0
    %748 = vmatpush1.msra.mxu0 %v736
    %749 = vmatprep.subr.mxu0 0.0
    %750 = vmatpush1.msra.mxu0 0.0
    %751 = vmatprep.subr.mxu0 0.0
    %752 = vmatpush1.msra.mxu0 0.0
    %753 = vmatprep.subr.mxu0 0.0
    %754 = vmatpush1.msra.mxu0 0.0
    %755 = vmatprep.subr.mxu0 0.0
    %756 = vmatpush1.msra.mxu0 0.0
    %757 = vmatprep.subr.mxu0 0.0
    %758 = vmatpush1.msra.mxu0 0.0
    %759 = vmatprep.subr.mxu0 0.0
    %760 = vmatpush1.msra.mxu0 0.0
    %761 = vmatprep.subr.mxu0 0.0
    %762 = vmatpush1.msra.mxu0 0.0
    %763 = vmatprep.subr.mxu0 0.0
    %764 = vmatpush1.msra.mxu0 0.0
    %765 = vmatprep.subr.mxu0 0.0
    %766 = vmatpush1.msra.mxu0 0.0
    %767 = vmatprep.subr.mxu0 0.0
    %768 = vmatpush1.msra.mxu0 0.0
    %769 = vmatprep.subr.mxu0 0.0
    %770 = vmatpush1.msra.mxu0 0.0
    %771 = vmatprep.subr.mxu0 0.0
    %772 = vmatpush1.msra.mxu0 0.0
    %773 = vmatprep.subr.mxu0 0.0
    %774 = vmatpush1.msra.mxu0 0.0
    %775 = vmatprep.subr.mxu0 0.0
    %776 = vmatpush1.msra.mxu0 0.0
    %777 = vmatprep.subr.mxu0 0.0
    %778 = vmatpush1.msra.mxu0 0.0
    %779 = vmatprep.subr.mxu0 0.0
    %780 = vmatpush1.msra.mxu0 0.0
    %781 = vmatprep.subr.mxu0 0.0
    %782 = vmatpush1.msra.mxu0 0.0
    %783 = vmatprep.subr.mxu0 0.0
    %784 = vmatpush1.msra.mxu0 0.0
    %785 = vmatprep.subr.mxu0 0.0
    %786 = vmatpush1.msra.mxu0 0.0
    %787 = vmatprep.subr.mxu0 0.0
    %788 = vmatpush1.msra.mxu0 0.0
    %789 = vmatprep.subr.mxu0 0.0
    %790 = vmatpush1.msra.mxu0 0.0
    %791 = vmatprep.subr.mxu0 0.0
    %792 = vmatpush1.msra.mxu0 0.0
    %793 = vmatprep.subr.mxu0 0.0
    %794 = vmatpush1.msra.mxu0 0.0
    %795 = vmatprep.subr.mxu0 0.0
    %796 = vmatpush1.msra.mxu0 0.0
    %797 = vmatprep.subr.mxu0 0.0
    %798 = vmatpush1.msra.mxu0 0.0
    %799 = vmatprep.subr.mxu0 0.0
    %800 = vmatpush1.msra.mxu0 0.0
    %801 = vmatprep.subr.mxu0 0.0
    %802 = vmatpush1.msra.mxu0 0.0
    %803 = vmatprep.subr.mxu0 0.0
    %804 = vmatpush1.msra.mxu0 0.0
    %805 = vmatprep.mubr.f32.mxu0 0.0
    %806 = vmatmul.mubr.f32.gmra.mrb[0].mxu0 %v739
    %v807 = vpop.f32.mrb[0].mxu0
    %v808 = vadd.f32 0.0, %v807
    %v809 = vpop.f32.mrb[0].mxu0
    %810 = vdwg.mxu0
    %v812 = vrot.slane %v808, 2
    %v814 = vadd.f32 %v145, %v812
    %v815 = vtanh.pop %v814
    %816 = vst.msk [vmem:[#allocation2 + $0x8] sm:$0xc0] %vm483, %v815
    %817 = vst.msk [vmem:[#allocation8 - $0x6] sm:$0xc0] %vm483, %v815
    %v818 = vld [vmem:[#allocation2] sm:$0xff]
    %v819 = vld [vmem:[#allocation2 + $0x8] sm:$0xff]
    %v820 = vld [vmem:[%s5] sm:$0xff]
    %v821 = vld [vmem:[%s5 + $0x8] sm:$0xff]
    %v822 = vld [vmem:[%s5 + $0x10] sm:$0xff]
    %v823 = vld [vmem:[%s5 + $0x18] sm:$0xff]
    %v824 = vld [vmem:[%s6] sm:$0x1]
    %v826 = vlaneseq
    %v827 = vshrl.u32 %v826, 7
    %v828 = vsub.s32 0, %v827
    %v829 = vrot.slane %v824, %v828
    %v832 = vsel %vm153, %v818, 0
    %v835 = vsel %vm153, %v819, 0
    %837 = vmatprep.subr.mxu0 0.0
    %838 = vmatpush1.msra.mxu0 %v820
    %839 = vmatprep.subr.mxu0 0.0
    %840 = vmatpush1.msra.mxu0 %v821
    %841 = vmatprep.subr.mxu0 0.0
    %842 = vmatpush1.msra.mxu0 %v822
    %843 = vmatprep.subr.mxu0 0.0
    %844 = vmatpush1.msra.mxu0 %v823
    %845 = vmatprep.subr.mxu0 0.0
    %846 = vmatpush1.msra.mxu0 0.0
    %847 = vmatprep.subr.mxu0 0.0
    %848 = vmatpush1.msra.mxu0 0.0
    %849 = vmatprep.subr.mxu0 0.0
    %850 = vmatpush1.msra.mxu0 0.0
    %851 = vmatprep.subr.mxu0 0.0
    %852 = vmatpush1.msra.mxu0 0.0
    %853 = vmatprep.subr.mxu0 0.0
    %854 = vmatpush1.msra.mxu0 0.0
    %855 = vmatprep.subr.mxu0 0.0
    %856 = vmatpush1.msra.mxu0 0.0
    %857 = vmatprep.subr.mxu0 0.0
    %858 = vmatpush1.msra.mxu0 0.0
    %859 = vmatprep.subr.mxu0 0.0
    %860 = vmatpush1.msra.mxu0 0.0
    %861 = vmatprep.subr.mxu0 0.0
    %862 = vmatpush1.msra.mxu0 0.0
    %863 = vmatprep.subr.mxu0 0.0
    %864 = vmatpush1.msra.mxu0 0.0
    %865 = vmatprep.subr.mxu0 0.0
    %866 = vmatpush1.msra.mxu0 0.0
    %867 = vmatprep.subr.mxu0 0.0
    %868 = vmatpush1.msra.mxu0 0.0
    %869 = vmatprep.subr.mxu0 0.0
    %870 = vmatpush1.msra.mxu0 0.0
    %871 = vmatprep.subr.mxu0 0.0
    %872 = vmatpush1.msra.mxu0 0.0
    %873 = vmatprep.subr.mxu0 0.0
    %874 = vmatpush1.msra.mxu0 0.0
    %875 = vmatprep.subr.mxu0 0.0
    %876 = vmatpush1.msra.mxu0 0.0
    %877 = vmatprep.subr.mxu0 0.0
    %878 = vmatpush1.msra.mxu0 0.0
    %879 = vmatprep.subr.mxu0 0.0
    %880 = vmatpush1.msra.mxu0 0.0
    %881 = vmatprep.subr.mxu0 0.0
    %882 = vmatpush1.msra.mxu0 0.0
    %883 = vmatprep.subr.mxu0 0.0
    %884 = vmatpush1.msra.mxu0 0.0
    %885 = vmatprep.subr.mxu0 0.0
    %886 = vmatpush1.msra.mxu0 0.0
    %887 = vmatprep.subr.mxu0 0.0
    %888 = vmatpush1.msra.mxu0 0.0
    %889 = vmatprep.subr.mxu0 0.0
    %890 = vmatpush1.msra.mxu0 0.0
    %891 = vmatprep.subr.mxu0 0.0
    %892 = vmatpush1.msra.mxu0 0.0
    %893 = vmatprep.subr.mxu0 0.0
    %894 = vmatpush1.msra.mxu0 0.0
    %895 = vmatprep.subr.mxu0 0.0
    %896 = vmatpush1.msra.mxu0 0.0
    %897 = vmatprep.subr.mxu0 0.0
    %898 = vmatpush1.msra.mxu0 0.0
    %899 = vmatprep.subr.mxu0 0.0
    %900 = vmatpush1.msra.mxu0 0.0
    %901 = vmatprep.mubr.f32.mxu0 0.0
    %902 = vmatmul.mubr.f32.gmra.mrb[0].mxu0 %v832
    %v903 = vpop.f32.mrb[0].mxu0
    %v904 = vadd.f32 %v829, %v903
    %v905 = vpop.f32.mrb[0].mxu0
    %906 = vmatprep.mubr.f32.mxu0 0.0
    %907 = vmatmul.mubr.f32.gmra.mrb[0].mxu0 %v835
    %v908 = vpop.f32.mrb[0].mxu0
    %v909 = vadd.f32 %v829, %v908
    %v910 = vpop.f32.mrb[0].mxu0
    %911 = vdwg.mxu0
    %vm912 = vcmask 64512
    %913 = vst.msk [vmem:[%s7] sm:$0xff] %vm912, %v904
    %914 = vst.msk [vmem:[%s7 + $0x8] sm:$0xff] %vm912, %v909
    // Predicated region
    $region38: #{tpu_custom_call.1} parent=1 // pred_check
      _
    $region39: #{tpu_custom_call.1} parent=1 // pred_check_branch
      %916 = sbr.rel (0) target = $region41
    $region40: #{tpu_custom_call.1} parent=1 // pred_region
      _
    $region41: #{tpu_custom_call.1} parent=1 // pred_fallthru
      _
    // Predicated region
    $region42: #{tpu_custom_call.1} parent=1 // pred_check
      _
    $region43: #{tpu_custom_call.1} parent=1 // pred_check_branch
      %918 = sbr.rel (0) target = $region45
    $region44: #{tpu_custom_call.1} parent=1 // pred_region
      %s920 = ssub.s32 32, 32
      %921 = vsyncadd [#allocation5], %s920
      %s923 = sshll.u32 [#allocation8], 4
      %s924 = int_to_ptr.vmem [resolvable:$true] %s923
      %926 = dma.vmem_to_hbm [thread:$0]  %s924, 32, %s8, [#allocation5]
    $region45: #{tpu_custom_call.1} parent=1 // pred_fallthru
      _
    // Predicated region
    $region46: #{tpu_custom_call.1} parent=1 // pred_check
      _
    $region47: #{tpu_custom_call.1} parent=1 // pred_check_branch
      %928 = sbr.rel (0) target = $region49
    $region48: #{tpu_custom_call.1} parent=1 // pred_region
      _
    $region49: #{tpu_custom_call.1} parent=1 // pred_fallthru
      _
    // Predicated region
    $region50: #{tpu_custom_call.1} parent=1 // pred_check
      _
    $region51: #{tpu_custom_call.1} parent=1 // pred_check_branch
      %930 = sbr.rel (0) target = $region53
    $region52: #{tpu_custom_call.1} parent=1 // pred_region
      %931 = dma.done [#allocation5], 32
    $region53: #{tpu_custom_call.1} parent=1 // pred_fallthru
      _
    %932 = vsyncpa [#allocation4], 1
    %933 = vsyncpa [#allocation7], 1
    %934 = vsyncpa [#allocation5], 1

</llo_original>
